<compile_context>
chip_gen: v6e
topology: v6e:2x2x1
jax: 0.10.0
libtpu: 0.0.40
codegen_flags: <defaults>
</compile_context>

<pallas_src>
import jax
import jax.numpy as jnp
from jax.experimental import pallas as pl
from jax.experimental.pallas import tpu as pltpu


def _round_up(x, m):
    return ((x + m - 1) // m) * m


def _vmem_capacity_bytes():
    """Per-TensorCore VMEM bytes; conservative fallback if the query fails."""
    try:
        info = pltpu.get_tpu_info()
        cap = getattr(info, "vmem_capacity_bytes", None)
        if cap:
            return int(cap)
    except Exception:
        pass
    return 64 * 1024 * 1024  # v7x per-TC size; safe lower bound for v5e/v6e


# ----------------------------------------------------------------------------
# Pallas kernel.  One grid step handles one token tile; the image-batch axis
# is folded into the block (b_fold rows) when B is small.
#   t_ref       : (B, L_pad)                 bf16; L2-normalized text latents,
#                                            exp(temperature) folded in (resident)
#   w_img_ref   : (L_pad, dim_image)         bf16 image projection (resident)
#   img_ref     : (b_fold, dim_image, i_tile) f32 encoder features, channel-major
#   spatial_ref : (b_fold, B, i_tile)  -> spatial_scores[j, :, tile]
#   global_ref  : (b_fold, i_tile)     -> spatial_scores[j].mean(over text b)
# ----------------------------------------------------------------------------
def _ctclip_head_kernel(t_ref, w_img_ref, img_ref, spatial_ref, global_ref):
    eps = 1e-12  # torch.nn.functional.normalize default eps
    b_fold = img_ref.shape[0]
    for j in range(b_fold):                       # static unroll (b_fold <= 8)
        x = img_ref[j].astype(jnp.bfloat16)       # (dim_image, i_tile)
        # image latents, transposed: vT[l, i] = sum_d W[l, d] * x[d, i]
        vT = jax.lax.dot_general(
            w_img_ref[...], x,
            dimension_numbers=(((1,), (0,)), ((), ())),
            preferred_element_type=jnp.float32)   # (L_pad, i_tile)
        # l2norm over the latent (sublane) axis: v / max(||v||, eps)
        sumsq = jnp.sum(vT * vT, axis=0, keepdims=True)
        vT = vT * jax.lax.rsqrt(jnp.maximum(sumsq, eps * eps))
        # scores[b, i] = sum_l t[b, l] * vT[l, i]  (temperature already in t)
        scores = jax.lax.dot_general(
            t_ref[...], vT.astype(jnp.bfloat16),
            dimension_numbers=(((1,), (0,)), ((), ())),
            preferred_element_type=jnp.float32)   # (B, i_tile)
        spatial_ref[j] = scores
        global_ref[j] = jnp.mean(scores, axis=0)


def ctclip_head(text_cls, image_feats, w_text, w_img, temperature, *,
                max_i_tile=None):
    """Pallas-call wrapper.

    text_cls    : (B, dim_text)           f32
    image_feats : (B, dim_image, I)       f32, encoder-native channel-major
    w_text      : (dim_latent, dim_text)  f32, nn.Linear native (out, in)
    w_img       : (dim_latent, dim_image) f32, nn.Linear native (out, in)
    temperature : scalar f32 (raw parameter; exp() is applied here)

    returns (global_result (B, I), spatial_scores (B, B, I))
    """
    B, _ = text_cls.shape
    Bi, dim_image, I = image_feats.shape
    assert B == Bi
    dim_latent = w_img.shape[0]
    eps = 1e-12

    # --- tiny text-side work, hoisted out of the grid (plain XLA) ------------
    t = jnp.dot(text_cls.astype(jnp.float32), w_text.T.astype(jnp.float32),
                preferred_element_type=jnp.float32)                  # (B, L)
    t = t * jax.lax.rsqrt(
        jnp.maximum(jnp.sum(t * t, axis=-1, keepdims=True), eps * eps))
    t = t * jnp.exp(jnp.asarray(temperature, jnp.float32))           # fold temp

    # --- pad the latent dim to a lane multiple (weights/text only; exact) ----
    L_pad = _round_up(dim_latent, 128)
    if L_pad != dim_latent:
        t = jnp.pad(t, ((0, 0), (0, L_pad - dim_latent)))
        w_img = jnp.pad(w_img, ((0, L_pad - dim_latent), (0, 0)))
    t_bf16 = t.astype(jnp.bfloat16)
    w_img_bf16 = w_img.astype(jnp.bfloat16)

    # --- batch folding + token-tile size from the per-chip VMEM budget -------
    fold_batch = B <= 8
    b_fold = B if fold_batch else 1
    vmem_cap = _vmem_capacity_bytes()
    budget = int(vmem_cap * 0.7)
    fixed = 2 * (B * L_pad + L_pad * dim_image) * 2        # resident bf16, 2 bufs
    i_tile = 128
    for cand in (2048, 1024, 512, 256, 128):
        per_tile = (3 * b_fold * dim_image * cand * 4      # streamed f32 input
                    + 2 * b_fold * B * cand * 4            # spatial out block
                    + 2 * b_fold * cand * 4)               # global out block
        if fixed + per_tile <= budget:
            i_tile = cand
            break
    if max_i_tile is not None:
        i_tile = min(i_tile, max_i_tile)
    if I <= i_tile:
        i_tile = I                                         # single full-width tile
    n_i = pl.cdiv(I, i_tile)                               # edge tile is masked

    if fold_batch:
        grid = (n_i,)
        t_map = lambda i: (0, 0)
        w_map = lambda i: (0, 0)
        img_map = lambda i: (0, 0, i)
        spatial_map = lambda i: (0, 0, i)
        global_map = lambda i: (0, i)
    else:
        grid = (n_i, B)
        t_map = lambda i, j: (0, 0)
        w_map = lambda i, j: (0, 0)
        img_map = lambda i, j: (j, 0, i)
        spatial_map = lambda i, j: (j, 0, i)
        global_map = lambda i, j: (j, i)

    img_block = (b_fold, dim_image, i_tile)
    if n_i >= 3:
        try:
            # deeper pipeline on the streamed input to keep the DMA hidden
            img_spec = pl.BlockSpec(img_block, img_map,
                                    pipeline_mode=pl.Buffered(3))
        except TypeError:  # older jax without pipeline_mode support
            img_spec = pl.BlockSpec(img_block, img_map)
    else:
        img_spec = pl.BlockSpec(img_block, img_map)

    cost = pl.CostEstimate(
        flops=2 * B * I * dim_image * L_pad + 2 * B * B * I * L_pad,
        transcendentals=B * I,
        bytes_accessed=(B * dim_image * I * 4 + L_pad * dim_image * 2
                        + B * L_pad * 2 + B * B * I * 4 + B * I * 4))

    spatial, global_result = pl.pallas_call(
        _ctclip_head_kernel,
        grid=grid,
        in_specs=[
            pl.BlockSpec((B, L_pad), t_map),             # text latents (resident)
            pl.BlockSpec((L_pad, dim_image), w_map),     # W_img (resident)
            img_spec,                                    # streamed image tokens
        ],
        out_specs=(
            pl.BlockSpec((b_fold, B, i_tile), spatial_map),
            pl.BlockSpec((b_fold, i_tile), global_map),
        ),
        out_shape=(
            jax.ShapeDtypeStruct((B, B, I), jnp.float32),
            jax.ShapeDtypeStruct((B, I), jnp.float32),
        ),
        compiler_params=pltpu.CompilerParams(
            dimension_semantics=("parallel",) * len(grid),
            vmem_limit_bytes=min(int(vmem_cap * 0.75), 100 * 1024 * 1024)),
        cost_estimate=cost,
    )(t_bf16, w_img_bf16, image_feats.astype(jnp.float32))

    return global_result, spatial


# ----------------------------------------------------------------------------
# CTCLIP module (plain-JAX glue around the Pallas head).
# ----------------------------------------------------------------------------
class CTCLIPPallas:
    def __init__(self, key, vocab_size, c_in, dim_text, dim_image, dim_latent,
                 temperature_init=1.0):
        k1, k2, k3, k4 = jax.random.split(key, 4)
        # Stand-in parameters for the external encoders (deterministic).
        self.text_embed = 0.02 * jax.random.normal(k1, (vocab_size, dim_text), jnp.float32)
        self.img_proj = 0.1 * jax.random.normal(k2, (c_in, dim_image), jnp.float32)
        # CTCLIP parameters: nn.Linear(dim, latent, bias=False), (out, in) layout.
        self.w_text = jax.random.normal(k3, (dim_latent, dim_text), jnp.float32) / jnp.sqrt(dim_text)
        self.w_img = jax.random.normal(k4, (dim_latent, dim_image), jnp.float32) / jnp.sqrt(dim_image)
        self.temperature = jnp.float32(temperature_init)

    def text_encoder(self, input_ids):
        # TODO(synk): stand-in for the external pre-initialized text transformer (embedding lookup only).
        return jnp.take(self.text_embed, input_ids, axis=0)  # (B, T, dim_text)

    def image_encoder(self, image):
        # TODO(synk): stand-in for the external pre-initialized image transformer.
        # image: (B, C, H, W) NCHW -> pointwise channel projection + 4x4 average pool.
        feat = jnp.einsum('bchw,cd->bdhw', image, self.img_proj)
        B, D, H, W = feat.shape
        feat = feat.reshape(B, D, H // 4, 4, W // 4, 4).mean(axis=(3, 5))  # (B, D, H/4, W/4)
        return [feat]  # list; forward() takes the last element

    def forward(self, text_inputs, image_inputs, return_loss=False):
        text_encodings = self.text_encoder(text_inputs["input_ids"])     # (B, T, dim_text)
        image_encodings = self.image_encoder(image_inputs)[-1]           # (B, dim_image, H', W')
        B, dim_image = image_encodings.shape[:2]
        # flatten(2) only — the permute(0, 2, 1) of the PyTorch spec is fused
        # into the kernel, which consumes the channel-major layout directly.
        image_feats = image_encodings.reshape(B, dim_image, -1)          # (B, dim_image, I)
        text_cls = text_encodings[:, 0, :]                               # (B, dim_text)

        global_result, spatial = ctclip_head(
            text_cls.astype(jnp.float32),
            image_feats.astype(jnp.float32),
            self.w_text, self.w_img, self.temperature)

        if return_loss:
            # text_to_image[b, i] == image_to_text[b, i] == spatial[b, b, i]
            # NOTE: matches the PyTorch spec exactly (no max-subtraction before
            # exp; diagonal over the (B, I) matrix) — can overflow for large
            # temperature-scaled logits, as in the original module.
            Bn = spatial.shape[0]
            tti = spatial[jnp.arange(Bn), jnp.arange(Bn), :]             # (B, I)
            tti_exp = jnp.exp(tti)
            pos = jnp.diagonal(tti_exp)                                  # (min(B, I),)
            denom = jnp.sum(tti_exp, axis=-1)                            # (B,)
            eps = 1e-20
            loss_dir = (-jnp.log(pos + eps) + jnp.log(denom + eps)).mean()
            return (loss_dir + loss_dir) / 2.0
        return global_result, spatial


if __name__ == "__main__":
    key = jax.random.PRNGKey(0)
    B, C, H, W = 2, 4, 16, 16
    T, vocab = 8, 64
    dim_text, dim_image, dim_latent = 32, 32, 32

    k_model, k_img, k_txt = jax.random.split(key, 3)
    model = CTCLIPPallas(k_model, vocab, C, dim_text, dim_image, dim_latent,
                         temperature_init=1.0)

    image = jax.random.normal(k_img, (B, C, H, W), jnp.float32)
    input_ids = jax.random.randint(k_txt, (B, T), 0, vocab)

    global_result, spatial = model.forward({"input_ids": input_ids}, image)
    jax.block_until_ready((global_result, spatial))

    # Pure-JAX f32 reference check (spec math, no Pallas, no bf16 cast).
    text_enc = model.text_encoder(input_ids)
    img_enc = model.image_encoder(image)[-1]
    img_tok = img_enc.reshape(B, dim_image, -1).transpose(0, 2, 1)
    t_ref = text_enc[:, 0, :] @ model.w_text.T
    t_ref = t_ref / jnp.maximum(jnp.linalg.norm(t_ref, axis=-1, keepdims=True), 1e-12)
    v_ref = img_tok @ model.w_img.T
    v_ref = v_ref / jnp.maximum(jnp.linalg.norm(v_ref, axis=-1, keepdims=True), 1e-12)
    temp_ref = jnp.exp(model.temperature)
    spatial_ref = jnp.einsum('bd,jid->jbi', t_ref, v_ref) * temp_ref
    global_ref = spatial_ref.mean(axis=1)

    assert spatial.shape == (B, B, (H // 4) * (W // 4))
    assert global_result.shape == (B, (H // 4) * (W // 4))
    # Tolerance accounts for the in-kernel bf16 casts (tokens, W_img, t, v).
    assert jnp.allclose(spatial, spatial_ref, atol=5e-2, rtol=5e-2), "spatial_scores mismatch"
    assert jnp.allclose(global_result, global_ref, atol=5e-2, rtol=5e-2), "global_result mismatch"

    # Extra check: multi-tile grid with a masked (partial) edge token tile.
    kf, kc = jax.random.split(jax.random.PRNGKey(1))
    I2 = 300  # not a multiple of the tile width
    feats2 = jax.random.normal(kf, (B, dim_image, I2), jnp.float32)
    cls2 = jax.random.normal(kc, (B, dim_text), jnp.float32)
    g2, s2 = ctclip_head(cls2, feats2, model.w_text, model.w_img,
                         model.temperature, max_i_tile=128)
    jax.block_until_ready((g2, s2))
    t2 = cls2 @ model.w_text.T
    t2 = t2 / jnp.maximum(jnp.linalg.norm(t2, axis=-1, keepdims=True), 1e-12)
    v2 = feats2.transpose(0, 2, 1) @ model.w_img.T
    v2 = v2 / jnp.maximum(jnp.linalg.norm(v2, axis=-1, keepdims=True), 1e-12)
    s2_ref = jnp.einsum('bd,jid->jbi', t2, v2) * temp_ref
    assert jnp.allclose(s2, s2_ref, atol=5e-2, rtol=5e-2), "multi-tile spatial mismatch"
    assert jnp.allclose(g2, s2_ref.mean(axis=1), atol=5e-2, rtol=5e-2), "multi-tile global mismatch"

    # Also exercise the return_loss path (computed from the kernel output).
    loss = model.forward({"input_ids": input_ids}, image, return_loss=True)
    jax.block_until_ready(loss)
    assert jnp.isfinite(loss)

    print("KERNEL_OK")
</pallas_src>

<mosaic_0001>
module attributes {stable_mosaic.version = 11 : i64} {
  func.func @_ctclip_head_kernel(%arg0: i32, %arg1: memref<2x128xbf16, #tpu.memory_space<vmem>>, %arg2: memref<128x32xbf16, #tpu.memory_space<vmem>>, %arg3: memref<2x32x16xf32, #tpu.memory_space<vmem>>, %arg4: memref<2x2x16xf32, #tpu.memory_space<vmem>>, %arg5: memref<2x16xf32, #tpu.memory_space<vmem>>) attributes {dimension_semantics = [#tpu.dimension_semantics<parallel>], iteration_bounds = array<i64: 1>, scalar_prefetch = 0 : i64, scratch_operands = 0 : i64, tpu.core_type = #tpu.core_type<tc>, window_params = [{pipeline_mode = #tpu.pipeline_mode<synchronous>, transform_indices = @transform_0, window_bounds = array<i64: 2, 128>}, {pipeline_mode = #tpu.pipeline_mode<synchronous>, transform_indices = @transform_1, window_bounds = array<i64: 128, 32>}, {transform_indices = @transform_2, window_bounds = array<i64: 2, 32, 16>}, {transform_indices = @transform_3, window_bounds = array<i64: 2, 2, 16>}, {transform_indices = @transform_4, window_bounds = array<i64: 2, 16>}]} {
    %c0 = arith.constant 0 : index
    %c0_0 = arith.constant 0 : index
    %c0_1 = arith.constant 0 : index
    %0 = vector.load %arg3[%c0, %c0_0, %c0_1] : memref<2x32x16xf32, #tpu.memory_space<vmem>>, vector<1x32x16xf32>
    %1 = vector.shape_cast %0 : vector<1x32x16xf32> to vector<32x16xf32>
    %2 = arith.truncf %1 : vector<32x16xf32> to vector<32x16xbf16>
    %c0_2 = arith.constant 0 : index
    %c0_3 = arith.constant 0 : index
    %3 = vector.load %arg2[%c0_2, %c0_3] : memref<128x32xbf16, #tpu.memory_space<vmem>>, vector<128x32xbf16>
    %cst = arith.constant dense<0.000000e+00> : vector<128x16xf32>
    %4 = tpu.matmul %3, %2, %cst {dimension_numbers = #tpu.dot_dimension_numbers<[1], [0], [0], [1], [0, 0, 1, 1], [], []>} : vector<128x32xbf16>, vector<32x16xbf16>, vector<128x16xf32> -> vector<128x16xf32>
    %5 = arith.mulf %4, %4 : vector<128x16xf32>
    %cst_4 = arith.constant dense<0.000000e+00> : vector<16xf32>
    %6 = vector.multi_reduction <add>, %5, %cst_4 [0] : vector<128x16xf32> to vector<16xf32>
    %7 = vector.shape_cast %6 : vector<16xf32> to vector<1x16xf32>
    %cst_5 = arith.constant 1.000000e-24 : f32
    %8 = vector.broadcast %cst_5 : f32 to vector<1x16xf32>
    %9 = arith.maximumf %7, %8 : vector<1x16xf32>
    %10 = math.rsqrt %9 : vector<1x16xf32>
    %11 = vector.broadcast %10 : vector<1x16xf32> to vector<128x16xf32>
    %12 = arith.mulf %4, %11 : vector<128x16xf32>
    %c0_6 = arith.constant 0 : index
    %c0_7 = arith.constant 0 : index
    %13 = vector.load %arg1[%c0_6, %c0_7] : memref<2x128xbf16, #tpu.memory_space<vmem>>, vector<2x128xbf16>
    %14 = arith.truncf %12 : vector<128x16xf32> to vector<128x16xbf16>
    %cst_8 = arith.constant dense<0.000000e+00> : vector<2x16xf32>
    %15 = tpu.matmul %13, %14, %cst_8 {dimension_numbers = #tpu.dot_dimension_numbers<[1], [0], [0], [1], [0, 0, 1, 1], [], []>} : vector<2x128xbf16>, vector<128x16xbf16>, vector<2x16xf32> -> vector<2x16xf32>
    %c0_9 = arith.constant 0 : index
    %c0_10 = arith.constant 0 : index
    %c0_11 = arith.constant 0 : index
    %16 = vector.load %arg4[%c0_9, %c0_10, %c0_11] : memref<2x2x16xf32, #tpu.memory_space<vmem>>, vector<1x2x16xf32>
    %17 = vector.shape_cast %16 : vector<1x2x16xf32> to vector<2x16xf32>
    %18 = vector.shape_cast %15 : vector<2x16xf32> to vector<1x2x16xf32>
    tpu.vector_store %arg4[%c0_9, %c0_10, %c0_11], %18 {strides = array<i32>} : memref<2x2x16xf32, #tpu.memory_space<vmem>>, vector<1x2x16xf32>,
    %cst_12 = arith.constant dense<0.000000e+00> : vector<16xf32>
    %19 = vector.multi_reduction <add>, %15, %cst_12 [0] : vector<2x16xf32> to vector<16xf32>
    %cst_13 = arith.constant 2.000000e+00 : f32
    %20 = vector.broadcast %cst_13 : f32 to vector<16xf32>
    %21 = arith.divf %19, %20 : vector<16xf32>
    %c0_14 = arith.constant 0 : index
    %c0_15 = arith.constant 0 : index
    %22 = vector.load %arg5[%c0_14, %c0_15] : memref<2x16xf32, #tpu.memory_space<vmem>>, vector<1x16xf32>
    %23 = vector.shape_cast %22 : vector<1x16xf32> to vector<16xf32>
    %24 = vector.shape_cast %21 : vector<16xf32> to vector<1x16xf32>
    tpu.vector_store %arg5[%c0_14, %c0_15], %24 {strides = array<i32>} : memref<2x16xf32, #tpu.memory_space<vmem>>, vector<1x16xf32>,
    %c1 = arith.constant 1 : index
    %c0_16 = arith.constant 0 : index
    %c0_17 = arith.constant 0 : index
    %25 = vector.load %arg3[%c1, %c0_16, %c0_17] : memref<2x32x16xf32, #tpu.memory_space<vmem>>, vector<1x32x16xf32>
    %26 = vector.shape_cast %25 : vector<1x32x16xf32> to vector<32x16xf32>
    %27 = arith.truncf %26 : vector<32x16xf32> to vector<32x16xbf16>
    %c0_18 = arith.constant 0 : index
    %c0_19 = arith.constant 0 : index
    %28 = vector.load %arg2[%c0_18, %c0_19] : memref<128x32xbf16, #tpu.memory_space<vmem>>, vector<128x32xbf16>
    %cst_20 = arith.constant dense<0.000000e+00> : vector<128x16xf32>
    %29 = tpu.matmul %28, %27, %cst_20 {dimension_numbers = #tpu.dot_dimension_numbers<[1], [0], [0], [1], [0, 0, 1, 1], [], []>} : vector<128x32xbf16>, vector<32x16xbf16>, vector<128x16xf32> -> vector<128x16xf32>
    %30 = arith.mulf %29, %29 : vector<128x16xf32>
    %cst_21 = arith.constant dense<0.000000e+00> : vector<16xf32>
    %31 = vector.multi_reduction <add>, %30, %cst_21 [0] : vector<128x16xf32> to vector<16xf32>
    %32 = vector.shape_cast %31 : vector<16xf32> to vector<1x16xf32>
    %cst_22 = arith.constant 1.000000e-24 : f32
    %33 = vector.broadcast %cst_22 : f32 to vector<1x16xf32>
    %34 = arith.maximumf %32, %33 : vector<1x16xf32>
    %35 = math.rsqrt %34 : vector<1x16xf32>
    %36 = vector.broadcast %35 : vector<1x16xf32> to vector<128x16xf32>
    %37 = arith.mulf %29, %36 : vector<128x16xf32>
    %c0_23 = arith.constant 0 : index
    %c0_24 = arith.constant 0 : index
    %38 = vector.load %arg1[%c0_23, %c0_24] : memref<2x128xbf16, #tpu.memory_space<vmem>>, vector<2x128xbf16>
    %39 = arith.truncf %37 : vector<128x16xf32> to vector<128x16xbf16>
    %cst_25 = arith.constant dense<0.000000e+00> : vector<2x16xf32>
    %40 = tpu.matmul %38, %39, %cst_25 {dimension_numbers = #tpu.dot_dimension_numbers<[1], [0], [0], [1], [0, 0, 1, 1], [], []>} : vector<2x128xbf16>, vector<128x16xbf16>, vector<2x16xf32> -> vector<2x16xf32>
    %c1_26 = arith.constant 1 : index
    %c0_27 = arith.constant 0 : index
    %c0_28 = arith.constant 0 : index
    %41 = vector.load %arg4[%c1_26, %c0_27, %c0_28] : memref<2x2x16xf32, #tpu.memory_space<vmem>>, vector<1x2x16xf32>
    %42 = vector.shape_cast %41 : vector<1x2x16xf32> to vector<2x16xf32>
    %43 = vector.shape_cast %40 : vector<2x16xf32> to vector<1x2x16xf32>
    tpu.vector_store %arg4[%c1_26, %c0_27, %c0_28], %43 {strides = array<i32>} : memref<2x2x16xf32, #tpu.memory_space<vmem>>, vector<1x2x16xf32>,
    %cst_29 = arith.constant dense<0.000000e+00> : vector<16xf32>
    %44 = vector.multi_reduction <add>, %40, %cst_29 [0] : vector<2x16xf32> to vector<16xf32>
    %cst_30 = arith.constant 2.000000e+00 : f32
    %45 = vector.broadcast %cst_30 : f32 to vector<16xf32>
    %46 = arith.divf %44, %45 : vector<16xf32>
    %c1_31 = arith.constant 1 : index
    %c0_32 = arith.constant 0 : index
    %47 = vector.load %arg5[%c1_31, %c0_32] : memref<2x16xf32, #tpu.memory_space<vmem>>, vector<1x16xf32>
    %48 = vector.shape_cast %47 : vector<1x16xf32> to vector<16xf32>
    %49 = vector.shape_cast %46 : vector<16xf32> to vector<1x16xf32>
    tpu.vector_store %arg5[%c1_31, %c0_32], %49 {strides = array<i32>} : memref<2x16xf32, #tpu.memory_space<vmem>>, vector<1x16xf32>,
    return
  }
  func.func @transform_0(%arg0: i32) -> (i32, i32) {
    %c0_i32 = arith.constant 0 : i32
    %c0_i32_0 = arith.constant 0 : i32
    %c0_i32_1 = arith.constant 0 : i32
    return %c0_i32, %c0_i32_0 : i32, i32
  }
  func.func @transform_1(%arg0: i32) -> (i32, i32) {
    %c0_i32 = arith.constant 0 : i32
    %c0_i32_0 = arith.constant 0 : i32
    %c0_i32_1 = arith.constant 0 : i32
    return %c0_i32, %c0_i32_0 : i32, i32
  }
  func.func @transform_2(%arg0: i32) -> (i32, i32, i32) {
    %c0_i32 = arith.constant 0 : i32
    %c0_i32_0 = arith.constant 0 : i32
    %c0_i32_1 = arith.constant 0 : i32
    return %c0_i32, %c0_i32_0, %arg0 : i32, i32, i32
  }
  func.func @transform_3(%arg0: i32) -> (i32, i32, i32) {
    %c0_i32 = arith.constant 0 : i32
    %c0_i32_0 = arith.constant 0 : i32
    %c0_i32_1 = arith.constant 0 : i32
    return %c0_i32, %c0_i32_0, %arg0 : i32, i32, i32
  }
  func.func @transform_4(%arg0: i32) -> (i32, i32) {
    %c0_i32 = arith.constant 0 : i32
    %c0_i32_0 = arith.constant 0 : i32
    return %c0_i32, %arg0 : i32, i32
  }
}

</mosaic_0001>

<llo_original>
// kernel: tpu_custom_call.1
$region0: #{tpu_custom_call.1}
  #allocation0 [shape = 'u32[]', space=smem, size = 0x4, offset = 0x4, fixed_abs, tag = 'smem constant byte address 0x4 - core index']
  #allocation1 [shape = 'u32[144,128]{1,0:T(1,128)}', space=vmem, size = 0x12000, scoped, tag = 'internal scratch']
  %s0 = inlined_call_operand.vmem [shape: bf16[2,128], index: 0, kind: input, shape index: {}]
  %s1 = inlined_call_operand.vmem [shape: bf16[128,32], index: 1, kind: input, shape index: {}]
  %s2 = inlined_call_operand.vmem [shape: f32[2,32,16], index: 2, kind: input, shape index: {}]
  %s3 = inlined_call_operand.hbm [shape: f32[2,2,16], index: 3, kind: output, shape index: {0}]
  %s4 = inlined_call_operand.hbm [shape: f32[2,16], index: 4, kind: output, shape index: {1}]
  %5 = xla_tuple %s3, %s4
  %s6 = sld [smem:[#allocation0]]
  $region30: #{tpu_custom_call.1} parent=0
    _
  %s8 = ssub.s32 1, %s6
  %s9 = scalar_select 0, %s8, %s6
  $region1: #{tpu_custom_call.1} parent=0
    #allocation2 [shape = 'u8[2048]{0}', space=vmem, size = 0x800, scoped, tag = 'output window, operand 0, single buffered']
    #allocation3 [shape = 's32[1]{0}', space=sflag, size = 0x4, scoped, tag = 'scoped memory for tpu_custom_call.1']
    #allocation4 [shape = 'u8[1024]{0}', space=vmem, size = 0x400, scoped, tag = 'output window, operand 1, single buffered']
    #allocation5 [shape = 's32[1]{0}', space=sflag, size = 0x4, scoped, tag = 'scoped memory for tpu_custom_call.1']
    %10 = vsyncpa [#allocation3], 0
    %11 = vsyncpa [#allocation5], 0
    // Predicated region
    $region2: #{tpu_custom_call.1} parent=1 // pred_check
      _
    $region3: #{tpu_custom_call.1} parent=1 // pred_check_branch
      %13 = sbr.rel (0) target = $region5
    $region4: #{tpu_custom_call.1} parent=1 // pred_region
      _
    $region5: #{tpu_custom_call.1} parent=1 // pred_fallthru
      _
    // Predicated region
    $region6: #{tpu_custom_call.1} parent=1 // pred_check
      _
    $region7: #{tpu_custom_call.1} parent=1 // pred_check_branch
      %15 = sbr.rel (0) target = $region9
    $region8: #{tpu_custom_call.1} parent=1 // pred_region
      _
    $region9: #{tpu_custom_call.1} parent=1 // pred_fallthru
      _
    // Predicated region
    $region10: #{tpu_custom_call.1} parent=1 // pred_check
      _
    $region11: #{tpu_custom_call.1} parent=1 // pred_check_branch
      %17 = sbr.rel (0) target = $region13
    $region12: #{tpu_custom_call.1} parent=1 // pred_region
      _
    $region13: #{tpu_custom_call.1} parent=1 // pred_fallthru
      _
    %v19 = vld [vmem:[%s2] sm:$0xff]
    %v20 = vld [vmem:[%s2 + $0x8] sm:$0xff]
    %v21 = vld [vmem:[%s2 + $0x10] sm:$0xff]
    %v22 = vld [vmem:[%s2 + $0x18] sm:$0xff]
    %v23 = vpack.c.bf16 %v20, %v19
    %v24 = vpack.c.bf16 %v22, %v21
    %v25 = vld [vmem:[%s1] sm:$0xf]
    %v26 = vld [vmem:[%s1 + $0x4] sm:$0xf]
    %v27 = vld [vmem:[%s1 + $0x8] sm:$0xf]
    %v28 = vld [vmem:[%s1 + $0xc] sm:$0xf]
    %v29 = vld [vmem:[%s1 + $0x10] sm:$0xf]
    %v30 = vld [vmem:[%s1 + $0x14] sm:$0xf]
    %v31 = vld [vmem:[%s1 + $0x18] sm:$0xf]
    %v32 = vld [vmem:[%s1 + $0x1c] sm:$0xf]
    %v33 = vld [vmem:[%s1 + $0x20] sm:$0xf]
    %v34 = vld [vmem:[%s1 + $0x24] sm:$0xf]
    %v35 = vld [vmem:[%s1 + $0x28] sm:$0xf]
    %v36 = vld [vmem:[%s1 + $0x2c] sm:$0xf]
    %v37 = vld [vmem:[%s1 + $0x30] sm:$0xf]
    %v38 = vld [vmem:[%s1 + $0x34] sm:$0xf]
    %v39 = vld [vmem:[%s1 + $0x38] sm:$0xf]
    %v40 = vld [vmem:[%s1 + $0x3c] sm:$0xf]
    %v57 = vunpack.c.l.b16 %v25
    %v58 = vunpack.c.l.b16 %v26
    %v59 = vunpack.c.l.b16 %v27
    %v60 = vunpack.c.l.b16 %v28
    %v61 = vunpack.c.l.b16 %v29
    %v62 = vunpack.c.l.b16 %v30
    %v63 = vunpack.c.l.b16 %v31
    %v64 = vunpack.c.l.b16 %v32
    %v65 = vunpack.c.l.b16 %v33
    %v66 = vunpack.c.l.b16 %v34
    %v67 = vunpack.c.l.b16 %v35
    %v68 = vunpack.c.l.b16 %v36
    %v69 = vunpack.c.l.b16 %v37
    %v70 = vunpack.c.l.b16 %v38
    %v71 = vunpack.c.l.b16 %v39
    %v72 = vunpack.c.l.b16 %v40
    %v73 = vpack.c.b16 %v58, %v57
    %v74 = vpack.c.b16 %v60, %v59
    %v75 = vpack.c.b16 %v62, %v61
    %v76 = vpack.c.b16 %v64, %v63
    %v77 = vpack.c.b16 %v66, %v65
    %v78 = vpack.c.b16 %v68, %v67
    %v79 = vpack.c.b16 %v70, %v69
    %v80 = vpack.c.b16 %v72, %v71
    %vm81 = vcmask 261120
    %v83 = vsel %vm81, %v73, 0
    %v86 = vsel %vm81, %v74, 0
    %v89 = vsel %vm81, %v75, 0
    %v92 = vsel %vm81, %v76, 0
    %v95 = vsel %vm81, %v77, 0
    %v98 = vsel %vm81, %v78, 0
    %v101 = vsel %vm81, %v79, 0
    %v104 = vsel %vm81, %v80, 0
    %106 = vmatprep.subr.bf16.mxu0 0
    %107 = vmatpush1.bf16.msra.mxu0 0
    %108 = vmatprep.subr.bf16.mxu0 0
    %109 = vmatpush1.bf16.msra.mxu0 0
    %110 = vmatprep.subr.bf16.mxu0 0
    %111 = vmatpush1.bf16.msra.mxu0 0
    %112 = vmatprep.subr.bf16.mxu0 0
    %113 = vmatpush1.bf16.msra.mxu0 0
    %114 = vmatprep.subr.bf16.mxu0 0
    %115 = vmatpush1.bf16.msra.mxu0 0
    %116 = vmatprep.subr.bf16.mxu0 0
    %117 = vmatpush1.bf16.msra.mxu0 0
    %118 = vmatprep.subr.bf16.mxu0 0
    %119 = vmatpush1.bf16.msra.mxu0 %v24
    %120 = vmatprep.subr.bf16.mxu0 0
    %121 = vmatpush1.bf16.msra.mxu0 %v23
    %122 = vmatprep.subr.bf16.mxu0 0
    %123 = vmatpush2.bf16.msra.mxu0 0
    %124 = vmatprep.subr.bf16.mxu0 0
    %125 = vmatpush2.bf16.msra.mxu0 0
    %126 = vmatprep.subr.bf16.mxu0 0
    %127 = vmatpush2.bf16.msra.mxu0 0
    %128 = vmatprep.subr.bf16.mxu0 0
    %129 = vmatpush2.bf16.msra.mxu0 0
    %130 = vmatprep.subr.bf16.mxu0 0
    %131 = vmatpush2.bf16.msra.mxu0 0
    %132 = vmatprep.subr.bf16.mxu0 0
    %133 = vmatpush2.bf16.msra.mxu0 0
    %134 = vmatprep.subr.bf16.mxu0 0
    %135 = vmatpush2.bf16.msra.mxu0 0
    %136 = vmatprep.subr.bf16.mxu0 0
    %137 = vmatpush2.bf16.msra.mxu0 0
    %138 = vmatprep.mubr.bf16.mxu0 0
    %139 = vmatmul.mubr.bf16.gmra.mxu0 %v83
    %v140 = vpop.f32.mrf.mxu0
    %v141 = vadd.f32 0.0, %v140
    %v142 = vpop.f32.mrf.mxu0
    %v143 = vpop.f32.mrf.mxu0
    %v144 = vadd.f32 0.0, %v143
    %v145 = vpop.f32.mrf.mxu0
    %146 = vmatprep.mubr.bf16.mxu0 0
    %147 = vmatmul.mubr.bf16.gmra.mxu0 %v86
    %v148 = vpop.f32.mrf.mxu0
    %v149 = vadd.f32 0.0, %v148
    %v150 = vpop.f32.mrf.mxu0
    %v151 = vpop.f32.mrf.mxu0
    %v152 = vadd.f32 0.0, %v151
    %v153 = vpop.f32.mrf.mxu0
    %154 = vmatprep.mubr.bf16.mxu0 0
    %155 = vmatmul.mubr.bf16.gmra.mxu0 %v89
    %v156 = vpop.f32.mrf.mxu0
    %v157 = vadd.f32 0.0, %v156
    %v158 = vpop.f32.mrf.mxu0
    %v159 = vpop.f32.mrf.mxu0
    %v160 = vadd.f32 0.0, %v159
    %v161 = vpop.f32.mrf.mxu0
    %162 = vmatprep.mubr.bf16.mxu0 0
    %163 = vmatmul.mubr.bf16.gmra.mxu0 %v92
    %v164 = vpop.f32.mrf.mxu0
    %v165 = vadd.f32 0.0, %v164
    %v166 = vpop.f32.mrf.mxu0
    %v167 = vpop.f32.mrf.mxu0
    %v168 = vadd.f32 0.0, %v167
    %v169 = vpop.f32.mrf.mxu0
    %170 = vmatprep.mubr.bf16.mxu0 0
    %171 = vmatmul.mubr.bf16.gmra.mxu0 %v95
    %v172 = vpop.f32.mrf.mxu0
    %v173 = vadd.f32 0.0, %v172
    %v174 = vpop.f32.mrf.mxu0
    %v175 = vpop.f32.mrf.mxu0
    %v176 = vadd.f32 0.0, %v175
    %v177 = vpop.f32.mrf.mxu0
    %178 = vmatprep.mubr.bf16.mxu0 0
    %179 = vmatmul.mubr.bf16.gmra.mxu0 %v98
    %v180 = vpop.f32.mrf.mxu0
    %v181 = vadd.f32 0.0, %v180
    %v182 = vpop.f32.mrf.mxu0
    %v183 = vpop.f32.mrf.mxu0
    %v184 = vadd.f32 0.0, %v183
    %v185 = vpop.f32.mrf.mxu0
    %186 = vmatprep.mubr.bf16.mxu0 0
    %187 = vmatmul.mubr.bf16.gmra.mxu0 %v101
    %v188 = vpop.f32.mrf.mxu0
    %v189 = vadd.f32 0.0, %v188
    %v190 = vpop.f32.mrf.mxu0
    %v191 = vpop.f32.mrf.mxu0
    %v192 = vadd.f32 0.0, %v191
    %v193 = vpop.f32.mrf.mxu0
    %194 = vmatprep.mubr.bf16.mxu0 0
    %195 = vmatmul.mubr.bf16.gmra.mxu0 %v104
    %v196 = vpop.f32.mrf.mxu0
    %v197 = vadd.f32 0.0, %v196
    %v198 = vpop.f32.mrf.mxu0
    %v199 = vpop.f32.mrf.mxu0
    %v200 = vadd.f32 0.0, %v199
    %v201 = vpop.f32.mrf.mxu0
    %202 = vdwg.mxu0
    %v203 = vmul.f32 %v141, %v141
    %v204 = vmul.f32 %v144, %v144
    %v205 = vmul.f32 %v149, %v149
    %v206 = vmul.f32 %v152, %v152
    %v207 = vmul.f32 %v157, %v157
    %v208 = vmul.f32 %v160, %v160
    %v209 = vmul.f32 %v165, %v165
    %v210 = vmul.f32 %v168, %v168
    %v211 = vmul.f32 %v173, %v173
    %v212 = vmul.f32 %v176, %v176
    %v213 = vmul.f32 %v181, %v181
    %v214 = vmul.f32 %v184, %v184
    %v215 = vmul.f32 %v189, %v189
    %v216 = vmul.f32 %v192, %v192
    %v217 = vmul.f32 %v197, %v197
    %v218 = vmul.f32 %v200, %v200
    %vm219 = vcmask 130048
    %v220 = vsel %vm219, %v203, 0.0
    %v221 = vsel %vm219, %v204, 0.0
    %v222 = vadd.f32 %v220, %v221
    %v223 = vsel %vm219, %v205, 0.0
    %v224 = vadd.f32 %v222, %v223
    %v225 = vsel %vm219, %v206, 0.0
    %v226 = vadd.f32 %v224, %v225
    %v227 = vsel %vm219, %v207, 0.0
    %v228 = vadd.f32 %v226, %v227
    %v229 = vsel %vm219, %v208, 0.0
    %v230 = vadd.f32 %v228, %v229
    %v231 = vsel %vm219, %v209, 0.0
    %v232 = vadd.f32 %v230, %v231
    %v233 = vsel %vm219, %v210, 0.0
    %v234 = vadd.f32 %v232, %v233
    %v235 = vsel %vm219, %v211, 0.0
    %v236 = vadd.f32 %v234, %v235
    %v237 = vsel %vm219, %v212, 0.0
    %v238 = vadd.f32 %v236, %v237
    %v239 = vsel %vm219, %v213, 0.0
    %v240 = vadd.f32 %v238, %v239
    %v241 = vsel %vm219, %v214, 0.0
    %v242 = vadd.f32 %v240, %v241
    %v243 = vsel %vm219, %v215, 0.0
    %v244 = vadd.f32 %v242, %v243
    %v245 = vsel %vm219, %v216, 0.0
    %v246 = vadd.f32 %v244, %v245
    %v247 = vsel %vm219, %v217, 0.0
    %v248 = vadd.f32 %v246, %v247
    %v249 = vsel %vm219, %v218, 0.0
    %v250 = vadd.f32 %v248, %v249
    %v251 = vrot.slane %v250, 4
    %v252 = vadd.f32 %v250, %v251
    %v253 = vrot.slane %v252, 2
    %v254 = vadd.f32 %v252, %v253
    %v255 = vrot.slane %v254, 1
    %v256 = vadd.f32 %v254, %v255
    %v257 = vmax.f32 %v256, 1e-24
    %v258 = vrsqrt.pop %v257
    %v259 = vmul.f32 %v141, %v258
    %v260 = vmul.f32 %v144, %v258
    %v261 = vmul.f32 %v149, %v258
    %v262 = vmul.f32 %v152, %v258
    %v263 = vmul.f32 %v157, %v258
    %v264 = vmul.f32 %v160, %v258
    %v265 = vmul.f32 %v165, %v258
    %v266 = vmul.f32 %v168, %v258
    %v267 = vmul.f32 %v173, %v258
    %v268 = vmul.f32 %v176, %v258
    %v269 = vmul.f32 %v181, %v258
    %v270 = vmul.f32 %v184, %v258
    %v271 = vmul.f32 %v189, %v258
    %v272 = vmul.f32 %v192, %v258
    %v273 = vmul.f32 %v197, %v258
    %v274 = vmul.f32 %v200, %v258
    %v275 = vld [vmem:[%s0] sm:$0x1]
    %v276 = vpack.c.bf16 %v260, %v259
    %v277 = vpack.c.bf16 %v262, %v261
    %v278 = vpack.c.bf16 %v264, %v263
    %v279 = vpack.c.bf16 %v266, %v265
    %v280 = vpack.c.bf16 %v268, %v267
    %v281 = vpack.c.bf16 %v270, %v269
    %v282 = vpack.c.bf16 %v272, %v271
    %v283 = vpack.c.bf16 %v274, %v273
    %284 = vmatprep.subr.bf16.mxu0 0
    %285 = vmatpush1.bf16.msra.mxu0 %v283
    %286 = vmatprep.subr.bf16.mxu0 0
    %287 = vmatpush1.bf16.msra.mxu0 %v282
    %288 = vmatprep.subr.bf16.mxu0 0
    %289 = vmatpush1.bf16.msra.mxu0 %v281
    %290 = vmatprep.subr.bf16.mxu0 0
    %291 = vmatpush1.bf16.msra.mxu0 %v280
    %292 = vmatprep.subr.bf16.mxu0 0
    %293 = vmatpush1.bf16.msra.mxu0 %v279
    %294 = vmatprep.subr.bf16.mxu0 0
    %295 = vmatpush1.bf16.msra.mxu0 %v278
    %296 = vmatprep.subr.bf16.mxu0 0
    %297 = vmatpush1.bf16.msra.mxu0 %v277
    %298 = vmatprep.subr.bf16.mxu0 0
    %299 = vmatpush1.bf16.msra.mxu0 %v276
    %300 = vmatprep.subr.bf16.mxu0 0
    %301 = vmatpush2.bf16.msra.mxu0 0
    %302 = vmatprep.subr.bf16.mxu0 0
    %303 = vmatpush2.bf16.msra.mxu0 0
    %304 = vmatprep.subr.bf16.mxu0 0
    %305 = vmatpush2.bf16.msra.mxu0 0
    %306 = vmatprep.subr.bf16.mxu0 0
    %307 = vmatpush2.bf16.msra.mxu0 0
    %308 = vmatprep.subr.bf16.mxu0 0
    %309 = vmatpush2.bf16.msra.mxu0 0
    %310 = vmatprep.subr.bf16.mxu0 0
    %311 = vmatpush2.bf16.msra.mxu0 0
    %312 = vmatprep.subr.bf16.mxu0 0
    %313 = vmatpush2.bf16.msra.mxu0 0
    %314 = vmatprep.subr.bf16.mxu0 0
    %315 = vmatpush2.bf16.msra.mxu0 0
    %316 = vmatprep.mubr.bf16.mxu0 0
    %317 = vmatmul.mubr.bf16.gmra.mxu0 %v275
    %v318 = vpop.f32.mrf.mxu0
    %v319 = vadd.f32 0.0, %v318
    %v320 = vpop.f32.mrf.mxu0
    %v321 = vpop.f32.mrf.mxu0
    %v322 = vpop.f32.mrf.mxu0
    %323 = vdwg.mxu0
    %vm324 = vcmask 123904
    %325 = vst.msk [vmem:[#allocation2] sm:$0x3] %vm324, %v319
    %v326 = vsel %vm324, %v319, 0.0
    %v327 = vrot.slane %v326, 4
    %v328 = vadd.f32 %v326, %v327
    %v329 = vrot.slane %v328, 2
    %v330 = vadd.f32 %v328, %v329
    %v331 = vrot.slane %v330, 1
    %v332 = vadd.f32 %v330, %v331
    %v333 = vrcp.pop 2.0
    %v334 = vmul.f32 %v332, %v333
    %vm335 = vcmask 122880
    %336 = vst.msk [vmem:[#allocation4] sm:$0x1] %vm335, %v334
    %s337 = scalar_lea.vmem %s2, 32
    %v338 = vld [vmem:[%s337] sm:$0xff]
    %v339 = vld [vmem:[%s337 + $0x8] sm:$0xff]
    %v340 = vld [vmem:[%s337 + $0x10] sm:$0xff]
    %v341 = vld [vmem:[%s337 + $0x18] sm:$0xff]
    %v342 = vpack.c.bf16 %v339, %v338
    %v343 = vpack.c.bf16 %v341, %v340
    %v344 = vld [vmem:[%s1] sm:$0xf]
    %v345 = vld [vmem:[%s1 + $0x4] sm:$0xf]
    %v346 = vld [vmem:[%s1 + $0x8] sm:$0xf]
    %v347 = vld [vmem:[%s1 + $0xc] sm:$0xf]
    %v348 = vld [vmem:[%s1 + $0x10] sm:$0xf]
    %v349 = vld [vmem:[%s1 + $0x14] sm:$0xf]
    %v350 = vld [vmem:[%s1 + $0x18] sm:$0xf]
    %v351 = vld [vmem:[%s1 + $0x1c] sm:$0xf]
    %v352 = vld [vmem:[%s1 + $0x20] sm:$0xf]
    %v353 = vld [vmem:[%s1 + $0x24] sm:$0xf]
    %v354 = vld [vmem:[%s1 + $0x28] sm:$0xf]
    %v355 = vld [vmem:[%s1 + $0x2c] sm:$0xf]
    %v356 = vld [vmem:[%s1 + $0x30] sm:$0xf]
    %v357 = vld [vmem:[%s1 + $0x34] sm:$0xf]
    %v358 = vld [vmem:[%s1 + $0x38] sm:$0xf]
    %v359 = vld [vmem:[%s1 + $0x3c] sm:$0xf]
    %v376 = vunpack.c.l.b16 %v344
    %v377 = vunpack.c.l.b16 %v345
    %v378 = vunpack.c.l.b16 %v346
    %v379 = vunpack.c.l.b16 %v347
    %v380 = vunpack.c.l.b16 %v348
    %v381 = vunpack.c.l.b16 %v349
    %v382 = vunpack.c.l.b16 %v350
    %v383 = vunpack.c.l.b16 %v351
    %v384 = vunpack.c.l.b16 %v352
    %v385 = vunpack.c.l.b16 %v353
    %v386 = vunpack.c.l.b16 %v354
    %v387 = vunpack.c.l.b16 %v355
    %v388 = vunpack.c.l.b16 %v356
    %v389 = vunpack.c.l.b16 %v357
    %v390 = vunpack.c.l.b16 %v358
    %v391 = vunpack.c.l.b16 %v359
    %v392 = vpack.c.b16 %v377, %v376
    %v393 = vpack.c.b16 %v379, %v378
    %v394 = vpack.c.b16 %v381, %v380
    %v395 = vpack.c.b16 %v383, %v382
    %v396 = vpack.c.b16 %v385, %v384
    %v397 = vpack.c.b16 %v387, %v386
    %v398 = vpack.c.b16 %v389, %v388
    %v399 = vpack.c.b16 %v391, %v390
    %v401 = vsel %vm81, %v392, 0
    %v404 = vsel %vm81, %v393, 0
    %v407 = vsel %vm81, %v394, 0
    %v410 = vsel %vm81, %v395, 0
    %v413 = vsel %vm81, %v396, 0
    %v416 = vsel %vm81, %v397, 0
    %v419 = vsel %vm81, %v398, 0
    %v422 = vsel %vm81, %v399, 0
    %424 = vmatprep.subr.bf16.mxu0 0
    %425 = vmatpush1.bf16.msra.mxu0 0
    %426 = vmatprep.subr.bf16.mxu0 0
    %427 = vmatpush1.bf16.msra.mxu0 0
    %428 = vmatprep.subr.bf16.mxu0 0
    %429 = vmatpush1.bf16.msra.mxu0 0
    %430 = vmatprep.subr.bf16.mxu0 0
    %431 = vmatpush1.bf16.msra.mxu0 0
    %432 = vmatprep.subr.bf16.mxu0 0
    %433 = vmatpush1.bf16.msra.mxu0 0
    %434 = vmatprep.subr.bf16.mxu0 0
    %435 = vmatpush1.bf16.msra.mxu0 0
    %436 = vmatprep.subr.bf16.mxu0 0
    %437 = vmatpush1.bf16.msra.mxu0 %v343
    %438 = vmatprep.subr.bf16.mxu0 0
    %439 = vmatpush1.bf16.msra.mxu0 %v342
    %440 = vmatprep.subr.bf16.mxu0 0
    %441 = vmatpush2.bf16.msra.mxu0 0
    %442 = vmatprep.subr.bf16.mxu0 0
    %443 = vmatpush2.bf16.msra.mxu0 0
    %444 = vmatprep.subr.bf16.mxu0 0
    %445 = vmatpush2.bf16.msra.mxu0 0
    %446 = vmatprep.subr.bf16.mxu0 0
    %447 = vmatpush2.bf16.msra.mxu0 0
    %448 = vmatprep.subr.bf16.mxu0 0
    %449 = vmatpush2.bf16.msra.mxu0 0
    %450 = vmatprep.subr.bf16.mxu0 0
    %451 = vmatpush2.bf16.msra.mxu0 0
    %452 = vmatprep.subr.bf16.mxu0 0
    %453 = vmatpush2.bf16.msra.mxu0 0
    %454 = vmatprep.subr.bf16.mxu0 0
    %455 = vmatpush2.bf16.msra.mxu0 0
    %456 = vmatprep.mubr.bf16.mxu0 0
    %457 = vmatmul.mubr.bf16.gmra.mxu0 %v401
    %v458 = vpop.f32.mrf.mxu0
    %v459 = vadd.f32 0.0, %v458
    %v460 = vpop.f32.mrf.mxu0
    %v461 = vpop.f32.mrf.mxu0
    %v462 = vadd.f32 0.0, %v461
    %v463 = vpop.f32.mrf.mxu0
    %464 = vmatprep.mubr.bf16.mxu0 0
    %465 = vmatmul.mubr.bf16.gmra.mxu0 %v404
    %v466 = vpop.f32.mrf.mxu0
    %v467 = vadd.f32 0.0, %v466
    %v468 = vpop.f32.mrf.mxu0
    %v469 = vpop.f32.mrf.mxu0
    %v470 = vadd.f32 0.0, %v469
    %v471 = vpop.f32.mrf.mxu0
    %472 = vmatprep.mubr.bf16.mxu0 0
    %473 = vmatmul.mubr.bf16.gmra.mxu0 %v407
    %v474 = vpop.f32.mrf.mxu0
    %v475 = vadd.f32 0.0, %v474
    %v476 = vpop.f32.mrf.mxu0
    %v477 = vpop.f32.mrf.mxu0
    %v478 = vadd.f32 0.0, %v477
    %v479 = vpop.f32.mrf.mxu0
    %480 = vmatprep.mubr.bf16.mxu0 0
    %481 = vmatmul.mubr.bf16.gmra.mxu0 %v410
    %v482 = vpop.f32.mrf.mxu0
    %v483 = vadd.f32 0.0, %v482
    %v484 = vpop.f32.mrf.mxu0
    %v485 = vpop.f32.mrf.mxu0
    %v486 = vadd.f32 0.0, %v485
    %v487 = vpop.f32.mrf.mxu0
    %488 = vmatprep.mubr.bf16.mxu0 0
    %489 = vmatmul.mubr.bf16.gmra.mxu0 %v413
    %v490 = vpop.f32.mrf.mxu0
    %v491 = vadd.f32 0.0, %v490
    %v492 = vpop.f32.mrf.mxu0
    %v493 = vpop.f32.mrf.mxu0
    %v494 = vadd.f32 0.0, %v493
    %v495 = vpop.f32.mrf.mxu0
    %496 = vmatprep.mubr.bf16.mxu0 0
    %497 = vmatmul.mubr.bf16.gmra.mxu0 %v416
    %v498 = vpop.f32.mrf.mxu0
    %v499 = vadd.f32 0.0, %v498
    %v500 = vpop.f32.mrf.mxu0
    %v501 = vpop.f32.mrf.mxu0
    %v502 = vadd.f32 0.0, %v501
    %v503 = vpop.f32.mrf.mxu0
    %504 = vmatprep.mubr.bf16.mxu0 0
    %505 = vmatmul.mubr.bf16.gmra.mxu0 %v419
    %v506 = vpop.f32.mrf.mxu0
    %v507 = vadd.f32 0.0, %v506
    %v508 = vpop.f32.mrf.mxu0
    %v509 = vpop.f32.mrf.mxu0
    %v510 = vadd.f32 0.0, %v509
    %v511 = vpop.f32.mrf.mxu0
    %512 = vmatprep.mubr.bf16.mxu0 0
    %513 = vmatmul.mubr.bf16.gmra.mxu0 %v422
    %v514 = vpop.f32.mrf.mxu0
    %v515 = vadd.f32 0.0, %v514
    %v516 = vpop.f32.mrf.mxu0
    %v517 = vpop.f32.mrf.mxu0
    %v518 = vadd.f32 0.0, %v517
    %v519 = vpop.f32.mrf.mxu0
    %520 = vdwg.mxu0
    %v521 = vmul.f32 %v459, %v459
    %v522 = vmul.f32 %v462, %v462
    %v523 = vmul.f32 %v467, %v467
    %v524 = vmul.f32 %v470, %v470
    %v525 = vmul.f32 %v475, %v475
    %v526 = vmul.f32 %v478, %v478
    %v527 = vmul.f32 %v483, %v483
    %v528 = vmul.f32 %v486, %v486
    %v529 = vmul.f32 %v491, %v491
    %v530 = vmul.f32 %v494, %v494
    %v531 = vmul.f32 %v499, %v499
    %v532 = vmul.f32 %v502, %v502
    %v533 = vmul.f32 %v507, %v507
    %v534 = vmul.f32 %v510, %v510
    %v535 = vmul.f32 %v515, %v515
    %v536 = vmul.f32 %v518, %v518
    %v537 = vsel %vm219, %v521, 0.0
    %v538 = vsel %vm219, %v522, 0.0
    %v539 = vadd.f32 %v537, %v538
    %v540 = vsel %vm219, %v523, 0.0
    %v541 = vadd.f32 %v539, %v540
    %v542 = vsel %vm219, %v524, 0.0
    %v543 = vadd.f32 %v541, %v542
    %v544 = vsel %vm219, %v525, 0.0
    %v545 = vadd.f32 %v543, %v544
    %v546 = vsel %vm219, %v526, 0.0
    %v547 = vadd.f32 %v545, %v546
    %v548 = vsel %vm219, %v527, 0.0
    %v549 = vadd.f32 %v547, %v548
    %v550 = vsel %vm219, %v528, 0.0
    %v551 = vadd.f32 %v549, %v550
    %v552 = vsel %vm219, %v529, 0.0
    %v553 = vadd.f32 %v551, %v552
    %v554 = vsel %vm219, %v530, 0.0
    %v555 = vadd.f32 %v553, %v554
    %v556 = vsel %vm219, %v531, 0.0
    %v557 = vadd.f32 %v555, %v556
    %v558 = vsel %vm219, %v532, 0.0
    %v559 = vadd.f32 %v557, %v558
    %v560 = vsel %vm219, %v533, 0.0
    %v561 = vadd.f32 %v559, %v560
    %v562 = vsel %vm219, %v534, 0.0
    %v563 = vadd.f32 %v561, %v562
    %v564 = vsel %vm219, %v535, 0.0
    %v565 = vadd.f32 %v563, %v564
    %v566 = vsel %vm219, %v536, 0.0
    %v567 = vadd.f32 %v565, %v566
    %v568 = vrot.slane %v567, 4
    %v569 = vadd.f32 %v567, %v568
    %v570 = vrot.slane %v569, 2
    %v571 = vadd.f32 %v569, %v570
    %v572 = vrot.slane %v571, 1
    %v573 = vadd.f32 %v571, %v572
    %v574 = vmax.f32 %v573, 1e-24
    %v575 = vrsqrt.pop %v574
    %v576 = vmul.f32 %v459, %v575
    %v577 = vmul.f32 %v462, %v575
    %v578 = vmul.f32 %v467, %v575
    %v579 = vmul.f32 %v470, %v575
    %v580 = vmul.f32 %v475, %v575
    %v581 = vmul.f32 %v478, %v575
    %v582 = vmul.f32 %v483, %v575
    %v583 = vmul.f32 %v486, %v575
    %v584 = vmul.f32 %v491, %v575
    %v585 = vmul.f32 %v494, %v575
    %v586 = vmul.f32 %v499, %v575
    %v587 = vmul.f32 %v502, %v575
    %v588 = vmul.f32 %v507, %v575
    %v589 = vmul.f32 %v510, %v575
    %v590 = vmul.f32 %v515, %v575
    %v591 = vmul.f32 %v518, %v575
    %v592 = vld [vmem:[%s0] sm:$0x1]
    %v593 = vpack.c.bf16 %v577, %v576
    %v594 = vpack.c.bf16 %v579, %v578
    %v595 = vpack.c.bf16 %v581, %v580
    %v596 = vpack.c.bf16 %v583, %v582
    %v597 = vpack.c.bf16 %v585, %v584
    %v598 = vpack.c.bf16 %v587, %v586
    %v599 = vpack.c.bf16 %v589, %v588
    %v600 = vpack.c.bf16 %v591, %v590
    %601 = vmatprep.subr.bf16.mxu0 0
    %602 = vmatpush1.bf16.msra.mxu0 %v600
    %603 = vmatprep.subr.bf16.mxu0 0
    %604 = vmatpush1.bf16.msra.mxu0 %v599
    %605 = vmatprep.subr.bf16.mxu0 0
    %606 = vmatpush1.bf16.msra.mxu0 %v598
    %607 = vmatprep.subr.bf16.mxu0 0
    %608 = vmatpush1.bf16.msra.mxu0 %v597
    %609 = vmatprep.subr.bf16.mxu0 0
    %610 = vmatpush1.bf16.msra.mxu0 %v596
    %611 = vmatprep.subr.bf16.mxu0 0
    %612 = vmatpush1.bf16.msra.mxu0 %v595
    %613 = vmatprep.subr.bf16.mxu0 0
    %614 = vmatpush1.bf16.msra.mxu0 %v594
    %615 = vmatprep.subr.bf16.mxu0 0
    %616 = vmatpush1.bf16.msra.mxu0 %v593
    %617 = vmatprep.subr.bf16.mxu0 0
    %618 = vmatpush2.bf16.msra.mxu0 0
    %619 = vmatprep.subr.bf16.mxu0 0
    %620 = vmatpush2.bf16.msra.mxu0 0
    %621 = vmatprep.subr.bf16.mxu0 0
    %622 = vmatpush2.bf16.msra.mxu0 0
    %623 = vmatprep.subr.bf16.mxu0 0
    %624 = vmatpush2.bf16.msra.mxu0 0
    %625 = vmatprep.subr.bf16.mxu0 0
    %626 = vmatpush2.bf16.msra.mxu0 0
    %627 = vmatprep.subr.bf16.mxu0 0
    %628 = vmatpush2.bf16.msra.mxu0 0
    %629 = vmatprep.subr.bf16.mxu0 0
    %630 = vmatpush2.bf16.msra.mxu0 0
    %631 = vmatprep.subr.bf16.mxu0 0
    %632 = vmatpush2.bf16.msra.mxu0 0
    %633 = vmatprep.mubr.bf16.mxu0 0
    %634 = vmatmul.mubr.bf16.gmra.mxu0 %v592
    %v635 = vpop.f32.mrf.mxu0
    %v636 = vadd.f32 0.0, %v635
    %v637 = vpop.f32.mrf.mxu0
    %v638 = vpop.f32.mrf.mxu0
    %v639 = vpop.f32.mrf.mxu0
    %640 = vdwg.mxu0
    %s641 = scalar_lea.vmem [#allocation2], 2
    %642 = vst.msk [vmem:[%s641] sm:$0x3] %vm324, %v636
    %v643 = vsel %vm324, %v636, 0.0
    %v644 = vrot.slane %v643, 4
    %v645 = vadd.f32 %v643, %v644
    %v646 = vrot.slane %v645, 2
    %v647 = vadd.f32 %v645, %v646
    %v648 = vrot.slane %v647, 1
    %v649 = vadd.f32 %v647, %v648
    %v650 = vmul.f32 %v649, %v333
    %651 = vst.msk [vmem:[#allocation4 + $0x1] sm:$0x1] %vm335, %v650
    // Predicated region
    $region14: #{tpu_custom_call.1} parent=1 // pred_check
      _
    $region15: #{tpu_custom_call.1} parent=1 // pred_check_branch
      %653 = sbr.rel (0) target = $region17
    $region16: #{tpu_custom_call.1} parent=1 // pred_region
      %s655 = ssub.s32 64, 64
      %656 = vsyncadd [#allocation3], %s655
      %s657 = sshll.u32 [#allocation2], 4
      %s658 = int_to_ptr.vmem [resolvable:$true] %s657
      %663 = dma.vmem_to_hbm [thread:$0]  %s658, 64, %s3, [#allocation3], 32, 32, 2
    $region17: #{tpu_custom_call.1} parent=1 // pred_fallthru
      _
    // Predicated region
    $region18: #{tpu_custom_call.1} parent=1 // pred_check
      _
    $region19: #{tpu_custom_call.1} parent=1 // pred_check_branch
      %665 = sbr.rel (0) target = $region21
    $region20: #{tpu_custom_call.1} parent=1 // pred_region
      %s667 = ssub.s32 32, 32
      %668 = vsyncadd [#allocation5], %s667
      %s670 = sshll.u32 [#allocation4], 4
      %s671 = int_to_ptr.vmem [resolvable:$true] %s670
      %673 = dma.vmem_to_hbm [thread:$0]  %s671, 32, %s4, [#allocation5]
    $region21: #{tpu_custom_call.1} parent=1 // pred_fallthru
      _
    // Predicated region
    $region22: #{tpu_custom_call.1} parent=1 // pred_check
      _
    $region23: #{tpu_custom_call.1} parent=1 // pred_check_branch
      %675 = sbr.rel (0) target = $region25
    $region24: #{tpu_custom_call.1} parent=1 // pred_region
      %676 = dma.done [#allocation3], 64
    $region25: #{tpu_custom_call.1} parent=1 // pred_fallthru
      _
    // Predicated region
    $region26: #{tpu_custom_call.1} parent=1 // pred_check
      _
    $region27: #{tpu_custom_call.1} parent=1 // pred_check_branch
      %678 = sbr.rel (0) target = $region29
    $region28: #{tpu_custom_call.1} parent=1 // pred_region
      %679 = dma.done [#allocation5], 32
    $region29: #{tpu_custom_call.1} parent=1 // pred_fallthru
      _
    %680 = vsyncpa [#allocation3], 1
    %681 = vsyncpa [#allocation5], 1

</llo_original>
